<compile_context>
chip_gen: v6e
topology: v6e:2x2x1
jax: 0.10.0
libtpu: 0.0.40
codegen_flags: <defaults>
</compile_context>

<pallas_src>
import functools

import jax
import jax.numpy as jnp
from jax.experimental import pallas as pl
from jax.experimental.pallas import tpu as pltpu


def _round_up(x: int, m: int) -> int:
    return ((x + m - 1) // m) * m


def ffn_kernel(x_ref, w1_ref, b1_ref, w2_ref, b2_ref, out_ref, acc_ref):
    # x:   [TB, Ip]  (f32 or bf16)     w1: [Ip, TH] (bf16|f32)   b1: [1, TH] f32
    # w2:  [TH, Op]  (bf16|f32)        b2: [1, Op]  f32
    # out: [TB, Op]  out_dtype         acc: [TB, Op] f32 scratch
    k = pl.program_id(1)

    @pl.when(k == 0)
    def _():
        acc_ref[...] = jnp.zeros_like(acc_ref)

    x = x_ref[...].astype(w1_ref.dtype)
    # First layer, one hidden chunk: bias-add fused, immediately downcast and
    # fed into the second matmul (no full (TB, Hp) intermediate ever exists).
    h_chunk = jnp.dot(x, w1_ref[...], preferred_element_type=jnp.float32) + b1_ref[...]
    acc_ref[...] += jnp.dot(h_chunk.astype(w2_ref.dtype), w2_ref[...],
                            preferred_element_type=jnp.float32)

    @pl.when(k == pl.num_programs(1) - 1)
    def _():
        out_ref[...] = (acc_ref[...] + b2_ref[...]).astype(out_ref.dtype)


@functools.partial(jax.jit,
                   static_argnames=("block_b", "block_h", "use_bf16", "out_dtype"))
def ffn_forward(x, w1, b1, w2, b2, *, block_b: int = 256, block_h: int = 512,
                use_bf16: bool = True, out_dtype=None):
    """Fused FFN forward.

    x: [B, I]; w1: [I, H]; b1: [H] or [1, H]; w2: [H, O]; b2: [O] or [1, O].
    """
    if b1.ndim == 1:
        b1 = b1[None, :]
    if b2.ndim == 1:
        b2 = b2[None, :]

    B, I = x.shape
    H = w1.shape[1]
    O = w2.shape[1]
    out_dtype = x.dtype if out_dtype is None else jnp.dtype(out_dtype)

    # Lane alignment for feature dims.  128 is the hard layout minimum; the
    # H-chunk default (block_h=512) is a multiple of 256 so the 256x256 MXU on
    # v6e/v7x runs at full K-depth on the second matmul.
    LANE = 128
    Ip = _round_up(I, LANE)
    Op = _round_up(O, LANE)

    # Hidden-dim chunking: W1/W2 stream as (Ip, TH) / (TH, Op) blocks.
    Hp0 = _round_up(H, LANE)
    if Hp0 <= block_h:
        TH = Hp0
        Hp = Hp0
    else:
        TH = block_h
        Hp = _round_up(H, TH)

    # Adaptive batch tile: bounds padding waste to < 8 rows per tile.
    n_b = -(-B // block_b)
    TB = _round_up(-(-B // n_b), 8)
    Bp = n_b * TB
    n_h = Hp // TH

    # Zero padding keeps the math exact: padded x cols x padded W1 rows = 0,
    # padded hidden cols have zero weight/bias, padded batch/output sliced off.
    xp = jnp.pad(x, ((0, Bp - B), (0, Ip - I)))
    w1p = jnp.pad(w1, ((0, Ip - I), (0, Hp - H)))
    b1p = jnp.pad(b1, ((0, 0), (0, Hp - H)))
    w2p = jnp.pad(w2, ((0, Hp - H), (0, Op - O)))
    b2p = jnp.pad(b2, ((0, 0), (0, Op - O)))

    if use_bf16:
        # Weights cast once here (reused across every batch tile); x is cast
        # in-kernel.  Accumulation stays f32 via preferred_element_type.
        w1p = w1p.astype(jnp.bfloat16)
        w2p = w2p.astype(jnp.bfloat16)

    grid = (n_b, n_h)

    # Explicit VMEM budget: double-buffered streamed blocks + f32 accumulator.
    x_bytes = xp.dtype.itemsize
    w_bytes = w1p.dtype.itemsize
    o_bytes = out_dtype.itemsize
    vmem_need = (
        2 * TB * Ip * x_bytes      # x tile (double buffered across batch tiles)
        + 2 * Ip * TH * w_bytes    # w1 chunk
        + 2 * TH * 4               # b1 chunk (f32)
        + 2 * TH * Op * w_bytes    # w2 chunk
        + 2 * Op * 4               # b2
        + 2 * TB * Op * o_bytes    # out tile
        + TB * Op * 4              # f32 accumulator scratch
    )
    vmem_limit = int(min(100 * (1 << 20),
                         max(32 * (1 << 20), vmem_need + vmem_need // 4)))

    flops = 2 * Bp * Ip * Hp + 2 * Bp * Hp * Op
    bytes_accessed = (
        xp.size * x_bytes
        + n_b * (w1p.size * w_bytes + b1p.size * 4 + w2p.size * w_bytes)
        + b2p.size * 4
        + Bp * Op * o_bytes
    )

    out_padded = pl.pallas_call(
        ffn_kernel,
        out_shape=jax.ShapeDtypeStruct((Bp, Op), out_dtype),
        grid=grid,
        in_specs=[
            pl.BlockSpec((TB, Ip), lambda i, k: (i, 0)),   # x: per batch tile
            pl.BlockSpec((Ip, TH), lambda i, k: (0, k)),   # w1: streamed H-chunks
            pl.BlockSpec((1, TH), lambda i, k: (0, k)),    # b1: streamed H-chunks
            pl.BlockSpec((TH, Op), lambda i, k: (k, 0)),   # w2: streamed H-chunks
            pl.BlockSpec((1, Op), lambda i, k: (0, 0)),    # b2: constant (tiny)
        ],
        out_specs=pl.BlockSpec((TB, Op), lambda i, k: (i, 0)),
        scratch_shapes=[pltpu.VMEM((TB, Op), jnp.float32)],
        compiler_params=pltpu.CompilerParams(
            dimension_semantics=("parallel", "arbitrary"),
            vmem_limit_bytes=vmem_limit),
        cost_estimate=pl.CostEstimate(
            flops=flops, transcendentals=0, bytes_accessed=int(bytes_accessed)),
    )(xp, w1p, b1p, w2p, b2p)

    return out_padded[:B, :O]


def init_ffn_params(key, input_size, hidden_size, output_size):
    """Deterministic init mirroring nn.Linear's U(-1/sqrt(fan_in), 1/sqrt(fan_in))."""
    k1, k2, k3, k4 = jax.random.split(key, 4)
    bound1 = 1.0 / (input_size ** 0.5)
    bound2 = 1.0 / (hidden_size ** 0.5)
    # Stored as [in, out] (i.e. PyTorch weight transposed).
    w1 = jax.random.uniform(k1, (input_size, hidden_size), jnp.float32, -bound1, bound1)
    b1 = jax.random.uniform(k2, (1, hidden_size), jnp.float32, -bound1, bound1)
    w2 = jax.random.uniform(k3, (hidden_size, output_size), jnp.float32, -bound2, bound2)
    b2 = jax.random.uniform(k4, (1, output_size), jnp.float32, -bound2, bound2)
    return w1, b1, w2, b2


def _bf16_mirror_ref(x, w1, b1, w2, b2):
    """Reference mirroring the kernel's bf16 matmul operands / f32 accumulation."""
    xb = x.astype(jnp.bfloat16).astype(jnp.float32)
    w1b = w1.astype(jnp.bfloat16).astype(jnp.float32)
    w2b = w2.astype(jnp.bfloat16).astype(jnp.float32)
    h = xb @ w1b + b1.reshape(1, -1)
    return h.astype(jnp.bfloat16).astype(jnp.float32) @ w2b + b2.reshape(1, -1)


if __name__ == "__main__":
    key = jax.random.PRNGKey(0)
    kx, kp, kx2, kp2 = jax.random.split(key, 4)

    # --- 1) Demo shapes matching the PyTorch module spec (grid = 1x1) ---------
    batch, input_size, hidden_size, output_size = 8, 32, 64, 16
    x = jax.random.normal(kx, (batch, input_size), jnp.float32)
    w1, b1, w2, b2 = init_ffn_params(kp, input_size, hidden_size, output_size)

    out = jax.block_until_ready(ffn_forward(x, w1, b1, w2, b2))
    assert out.shape == (batch, output_size)

    # Tight check against the bf16-operand mirror (validates the kernel itself).
    ref_bf16 = _bf16_mirror_ref(x, w1, b1, w2, b2)
    assert jnp.allclose(out, ref_bf16, atol=2e-3, rtol=2e-3)

    # Loose check against the pure-f32 PyTorch-equivalent math (bf16 matmul
    # operands give ~1e-2 relative error, hence the loose tolerance).
    ref_f32 = (x @ w1 + b1) @ w2 + b2
    assert jnp.allclose(out, ref_f32, atol=1e-1, rtol=1e-1)

    # --- 2) Larger, awkward shapes: exercises batch tiling, H-chunking, padding,
    #        and 1-D nn.Linear-style biases (grid = 3 x 5) ----------------------
    B2, I2, H2, O2 = 300, 96, 1100, 200
    x2 = jax.random.normal(kx2, (B2, I2), jnp.float32)
    w1_2, b1_2, w2_2, b2_2 = init_ffn_params(kp2, I2, H2, O2)
    b1_1d = b1_2.reshape(-1)   # 1-D biases, as a ported nn.Linear checkpoint has
    b2_1d = b2_2.reshape(-1)

    out2 = jax.block_until_ready(
        ffn_forward(x2, w1_2, b1_1d, w2_2, b2_1d, block_b=128, block_h=256))
    assert out2.shape == (B2, O2)
    ref2 = _bf16_mirror_ref(x2, w1_2, b1_1d, w2_2, b2_1d)
    assert jnp.allclose(out2, ref2, atol=5e-3, rtol=5e-3)

    print("KERNEL_OK")
</pallas_src>

<mosaic_0001>
module attributes {stable_mosaic.version = 11 : i64} {
  func.func @ffn_kernel(%arg0: i32, %arg1: i32, %arg2: memref<8x128xf32, #tpu.memory_space<vmem>>, %arg3: memref<128x128xbf16, #tpu.memory_space<vmem>>, %arg4: memref<1x128xf32, #tpu.memory_space<vmem>>, %arg5: memref<128x128xbf16, #tpu.memory_space<vmem>>, %arg6: memref<1x128xf32, #tpu.memory_space<vmem>>, %arg7: memref<8x128xf32, #tpu.memory_space<vmem>>, %arg8: memref<8x128xf32, #tpu.memory_space<vmem>>) attributes {dimension_semantics = [#tpu.dimension_semantics<parallel>, #tpu.dimension_semantics<arbitrary>], iteration_bounds = array<i64: 1, 1>, scalar_prefetch = 0 : i64, scratch_operands = 1 : i64, tpu.core_type = #tpu.core_type<tc>, window_params = [{transform_indices = @transform_0, window_bounds = array<i64: 8, 128>}, {transform_indices = @transform_1, window_bounds = array<i64: 128, 128>}, {transform_indices = @transform_2, window_bounds = array<i64: 1, 128>}, {transform_indices = @transform_3, window_bounds = array<i64: 128, 128>}, {pipeline_mode = #tpu.pipeline_mode<synchronous>, transform_indices = @transform_4, window_bounds = array<i64: 1, 128>}, {transform_indices = @transform_5, window_bounds = array<i64: 8, 128>}]} {
    %c0_i32 = arith.constant 0 : i32
    %0 = arith.cmpi eq, %arg1, %c0_i32 : i32
    %1 = arith.extui %0 : i1 to i32
    %c0_i32_0 = arith.constant 0 : i32
    %2 = arith.cmpi ne, %1, %c0_i32_0 : i32
    scf.if %2 {
      %cst_15 = arith.constant 0.000000e+00 : f32
      %19 = vector.broadcast %cst_15 : f32 to vector<8x128xf32>
      %c0_16 = arith.constant 0 : index
      %c0_17 = arith.constant 0 : index
      %20 = vector.load %arg8[%c0_16, %c0_17] : memref<8x128xf32, #tpu.memory_space<vmem>>, vector<8x128xf32>
      tpu.vector_store %arg8[%c0_16, %c0_17], %19 {strides = array<i32>} : memref<8x128xf32, #tpu.memory_space<vmem>>, vector<8x128xf32>,
    } else {
    }
    %c0 = arith.constant 0 : index
    %c0_1 = arith.constant 0 : index
    %3 = vector.load %arg2[%c0, %c0_1] : memref<8x128xf32, #tpu.memory_space<vmem>>, vector<8x128xf32>
    %4 = arith.truncf %3 : vector<8x128xf32> to vector<8x128xbf16>
    %c0_2 = arith.constant 0 : index
    %c0_3 = arith.constant 0 : index
    %5 = vector.load %arg3[%c0_2, %c0_3] : memref<128x128xbf16, #tpu.memory_space<vmem>>, vector<128x128xbf16>
    %cst = arith.constant dense<0.000000e+00> : vector<8x128xf32>
    %6 = tpu.matmul %4, %5, %cst {dimension_numbers = #tpu.dot_dimension_numbers<[1], [0], [0], [1], [0, 0, 1, 1], [], []>} : vector<8x128xbf16>, vector<128x128xbf16>, vector<8x128xf32> -> vector<8x128xf32>
    %c0_4 = arith.constant 0 : index
    %c0_5 = arith.constant 0 : index
    %7 = vector.load %arg4[%c0_4, %c0_5] : memref<1x128xf32, #tpu.memory_space<vmem>>, vector<1x128xf32>
    %8 = vector.broadcast %7 : vector<1x128xf32> to vector<8x128xf32>
    %9 = arith.addf %6, %8 : vector<8x128xf32>
    %c0_6 = arith.constant 0 : index
    %c0_7 = arith.constant 0 : index
    %10 = vector.load %arg8[%c0_6, %c0_7] : memref<8x128xf32, #tpu.memory_space<vmem>>, vector<8x128xf32>
    %11 = arith.truncf %9 : vector<8x128xf32> to vector<8x128xbf16>
    %c0_8 = arith.constant 0 : index
    %c0_9 = arith.constant 0 : index
    %12 = vector.load %arg5[%c0_8, %c0_9] : memref<128x128xbf16, #tpu.memory_space<vmem>>, vector<128x128xbf16>
    %cst_10 = arith.constant dense<0.000000e+00> : vector<8x128xf32>
    %13 = tpu.matmul %11, %12, %cst_10 {dimension_numbers = #tpu.dot_dimension_numbers<[1], [0], [0], [1], [0, 0, 1, 1], [], []>} : vector<8x128xbf16>, vector<128x128xbf16>, vector<8x128xf32> -> vector<8x128xf32>
    %14 = arith.addf %10, %13 : vector<8x128xf32>
    %c0_11 = arith.constant 0 : index
    %c0_12 = arith.constant 0 : index
    %15 = vector.load %arg8[%c0_11, %c0_12] : memref<8x128xf32, #tpu.memory_space<vmem>>, vector<8x128xf32>
    tpu.vector_store %arg8[%c0_11, %c0_12], %14 {strides = array<i32>} : memref<8x128xf32, #tpu.memory_space<vmem>>, vector<8x128xf32>,
    %c0_i32_13 = arith.constant 0 : i32
    %16 = arith.cmpi eq, %arg1, %c0_i32_13 : i32
    %17 = arith.extui %16 : i1 to i32
    %c0_i32_14 = arith.constant 0 : i32
    %18 = arith.cmpi ne, %17, %c0_i32_14 : i32
    scf.if %18 {
      %c0_15 = arith.constant 0 : index
      %c0_16 = arith.constant 0 : index
      %19 = vector.load %arg8[%c0_15, %c0_16] : memref<8x128xf32, #tpu.memory_space<vmem>>, vector<8x128xf32>
      %c0_17 = arith.constant 0 : index
      %c0_18 = arith.constant 0 : index
      %20 = vector.load %arg6[%c0_17, %c0_18] : memref<1x128xf32, #tpu.memory_space<vmem>>, vector<1x128xf32>
      %21 = vector.broadcast %20 : vector<1x128xf32> to vector<8x128xf32>
      %22 = arith.addf %19, %21 : vector<8x128xf32>
      %c0_19 = arith.constant 0 : index
      %c0_20 = arith.constant 0 : index
      %23 = vector.load %arg7[%c0_19, %c0_20] : memref<8x128xf32, #tpu.memory_space<vmem>>, vector<8x128xf32>
      tpu.vector_store %arg7[%c0_19, %c0_20], %22 {strides = array<i32>} : memref<8x128xf32, #tpu.memory_space<vmem>>, vector<8x128xf32>,
    } else {
    }
    return
  }
  func.func @transform_0(%arg0: i32, %arg1: i32) -> (i32, i32) {
    %c0_i32 = arith.constant 0 : i32
    %c0_i32_0 = arith.constant 0 : i32
    return %arg0, %c0_i32 : i32, i32
  }
  func.func @transform_1(%arg0: i32, %arg1: i32) -> (i32, i32) {
    %c0_i32 = arith.constant 0 : i32
    %c0_i32_0 = arith.constant 0 : i32
    return %c0_i32, %arg1 : i32, i32
  }
  func.func @transform_2(%arg0: i32, %arg1: i32) -> (i32, i32) {
    %c0_i32 = arith.constant 0 : i32
    %c0_i32_0 = arith.constant 0 : i32
    return %c0_i32, %arg1 : i32, i32
  }
  func.func @transform_3(%arg0: i32, %arg1: i32) -> (i32, i32) {
    %c0_i32 = arith.constant 0 : i32
    %c0_i32_0 = arith.constant 0 : i32
    return %arg1, %c0_i32 : i32, i32
  }
  func.func @transform_4(%arg0: i32, %arg1: i32) -> (i32, i32) {
    %c0_i32 = arith.constant 0 : i32
    %c0_i32_0 = arith.constant 0 : i32
    %c0_i32_1 = arith.constant 0 : i32
    return %c0_i32, %c0_i32_0 : i32, i32
  }
  func.func @transform_5(%arg0: i32, %arg1: i32) -> (i32, i32) {
    %c0_i32 = arith.constant 0 : i32
    %c0_i32_0 = arith.constant 0 : i32
    return %arg0, %c0_i32 : i32, i32
  }
}

</mosaic_0001>

<llo_original>
// kernel: ffn_forward.1
$region0: #{ffn_forward.1}
  #allocation0 [shape = 'u32[]', space=smem, size = 0x4, offset = 0x4, fixed_abs, tag = 'smem constant byte address 0x4 - core index']
  #allocation1 [shape = 'u32[144,128]{1,0:T(1,128)}', space=vmem, size = 0x12000, scoped, tag = 'internal scratch']
  #allocation2 [shape = 'f32[8,128]{1,0:T(8,128)}', space=vmem, size = 0x1000, scoped, tag = 'scratch operand']
  %s0 = inlined_call_operand.vmem [shape: f32[8,128], index: 0, kind: input, shape index: {}]
  %s1 = inlined_call_operand.vmem [shape: bf16[128,128], index: 1, kind: input, shape index: {}]
  %s2 = inlined_call_operand.vmem [shape: f32[1,128], index: 2, kind: input, shape index: {}]
  %s3 = inlined_call_operand.vmem [shape: bf16[128,128], index: 3, kind: input, shape index: {}]
  %s4 = inlined_call_operand.vmem [shape: f32[1,128], index: 4, kind: input, shape index: {}]
  %s5 = inlined_call_operand.hbm [shape: f32[8,128], index: 5, kind: output, shape index: {}]
  %s6 = sld [smem:[#allocation0]]
  $region38: #{ffn_forward.1} parent=0
    _
  %s8 = ssub.s32 1, %s6
  %s9 = scalar_select 0, %s8, %s6
  $region1: #{ffn_forward.1} parent=0
    #allocation3 [shape = 'u8[4096]{0}', space=vmem, size = 0x1000, scoped, tag = 'output window, operand 0, single buffered']
    #allocation4 [shape = 's32[1]{0}', space=sflag, size = 0x4, scoped, tag = 'scoped memory for ffn_forward.1']
    %10 = vsyncpa [#allocation4], 0
    // Predicated region
    $region2: #{ffn_forward.1} parent=1 // pred_check
      _
    $region3: #{ffn_forward.1} parent=1 // pred_check_branch
      %12 = sbr.rel (0) target = $region5
    $region4: #{ffn_forward.1} parent=1 // pred_region
      _
    $region5: #{ffn_forward.1} parent=1 // pred_fallthru
      _
    // Predicated region
    $region6: #{ffn_forward.1} parent=1 // pred_check
      _
    $region7: #{ffn_forward.1} parent=1 // pred_check_branch
      %14 = sbr.rel (0) target = $region9
    $region8: #{ffn_forward.1} parent=1 // pred_region
      _
    $region9: #{ffn_forward.1} parent=1 // pred_fallthru
      _
    // Predicated region
    $region10: #{ffn_forward.1} parent=1 // pred_check
      _
    $region11: #{ffn_forward.1} parent=1 // pred_check_branch
      %16 = sbr.rel (0) target = $region13
    $region12: #{ffn_forward.1} parent=1 // pred_region
      _
    $region13: #{ffn_forward.1} parent=1 // pred_fallthru
      _
    // Predicated region
    $region14: #{ffn_forward.1} parent=1 // pred_check
      _
    $region15: #{ffn_forward.1} parent=1 // pred_check_branch
      %18 = sbr.rel (0) target = $region17
    $region16: #{ffn_forward.1} parent=1 // pred_region
      _
    $region17: #{ffn_forward.1} parent=1 // pred_fallthru
      _
    // Predicated region
    $region18: #{ffn_forward.1} parent=1 // pred_check
      _
    $region19: #{ffn_forward.1} parent=1 // pred_check_branch
      %20 = sbr.rel (0) target = $region21
    $region20: #{ffn_forward.1} parent=1 // pred_region
      _
    $region21: #{ffn_forward.1} parent=1 // pred_fallthru
      _
    %p22 = scmp.eq.s32.totalorder 0, 0
    // Predicated region
    $region22: #{ffn_forward.1} parent=1 // pred_check
      %p23 = pneg %p22
    $region23: #{ffn_forward.1} parent=1 // pred_check_branch
      %25 = sbr.rel (%p23) target = $region25
    $region24: #{ffn_forward.1} parent=1 // pred_region
      %26 = vst [vmem:[#allocation2] sm:$0xff] 0.0
    $region25: #{ffn_forward.1} parent=1 // pred_fallthru
      _
    %v27 = vld [vmem:[%s0] sm:$0xff]
    %v28 = vpack.c.bf16 %v27, %v27
    %v29 = vld [vmem:[%s1] sm:$0xf]
    %v30 = vld [vmem:[%s1 + $0x4] sm:$0xf]
    %v31 = vld [vmem:[%s1 + $0x8] sm:$0xf]
    %v32 = vld [vmem:[%s1 + $0xc] sm:$0xf]
    %v33 = vld [vmem:[%s1 + $0x10] sm:$0xf]
    %v34 = vld [vmem:[%s1 + $0x14] sm:$0xf]
    %v35 = vld [vmem:[%s1 + $0x18] sm:$0xf]
    %v36 = vld [vmem:[%s1 + $0x1c] sm:$0xf]
    %v37 = vld [vmem:[%s1 + $0x20] sm:$0xf]
    %v38 = vld [vmem:[%s1 + $0x24] sm:$0xf]
    %v39 = vld [vmem:[%s1 + $0x28] sm:$0xf]
    %v40 = vld [vmem:[%s1 + $0x2c] sm:$0xf]
    %v41 = vld [vmem:[%s1 + $0x30] sm:$0xf]
    %v42 = vld [vmem:[%s1 + $0x34] sm:$0xf]
    %v43 = vld [vmem:[%s1 + $0x38] sm:$0xf]
    %v44 = vld [vmem:[%s1 + $0x3c] sm:$0xf]
    %v45 = vld [vmem:[%s2] sm:$0x1]
    %v47 = vlaneseq
    %v48 = vshrl.u32 %v47, 7
    %v49 = vsub.s32 0, %v48
    %v50 = vrot.slane %v45, %v49
    %v68 = vunpack.c.l.b16 %v29
    %v69 = vunpack.c.l.b16 %v30
    %v70 = vunpack.c.l.b16 %v31
    %v71 = vunpack.c.l.b16 %v32
    %v72 = vunpack.c.l.b16 %v33
    %v73 = vunpack.c.l.b16 %v34
    %v74 = vunpack.c.l.b16 %v35
    %v75 = vunpack.c.l.b16 %v36
    %v76 = vunpack.c.l.b16 %v37
    %v77 = vunpack.c.l.b16 %v38
    %v78 = vunpack.c.l.b16 %v39
    %v79 = vunpack.c.l.b16 %v40
    %v80 = vunpack.c.l.b16 %v41
    %v81 = vunpack.c.l.b16 %v42
    %v82 = vunpack.c.l.b16 %v43
    %v83 = vunpack.c.l.b16 %v44
    %v84 = vpack.c.b16 %v69, %v68
    %v85 = vpack.c.b16 %v71, %v70
    %v86 = vpack.c.b16 %v73, %v72
    %v87 = vpack.c.b16 %v75, %v74
    %v88 = vpack.c.b16 %v77, %v76
    %v89 = vpack.c.b16 %v79, %v78
    %v90 = vpack.c.b16 %v81, %v80
    %v91 = vpack.c.b16 %v83, %v82
    %100 = vmatprep.subr.bf16.mxu0 0
    %101 = vmatpush1.bf16.msra.mxu0 %v91
    %102 = vmatprep.subr.bf16.mxu0 0
    %103 = vmatpush1.bf16.msra.mxu0 %v90
    %104 = vmatprep.subr.bf16.mxu0 0
    %105 = vmatpush1.bf16.msra.mxu0 %v89
    %106 = vmatprep.subr.bf16.mxu0 0
    %107 = vmatpush1.bf16.msra.mxu0 %v88
    %108 = vmatprep.subr.bf16.mxu0 0
    %109 = vmatpush1.bf16.msra.mxu0 %v87
    %110 = vmatprep.subr.bf16.mxu0 0
    %111 = vmatpush1.bf16.msra.mxu0 %v86
    %112 = vmatprep.subr.bf16.mxu0 0
    %113 = vmatpush1.bf16.msra.mxu0 %v85
    %114 = vmatprep.subr.bf16.mxu0 0
    %115 = vmatpush1.bf16.msra.mxu0 %v84
    %116 = vmatprep.subr.bf16.mxu0 0
    %117 = vmatpush2.bf16.msra.mxu0 0
    %118 = vmatprep.subr.bf16.mxu0 0
    %119 = vmatpush2.bf16.msra.mxu0 0
    %120 = vmatprep.subr.bf16.mxu0 0
    %121 = vmatpush2.bf16.msra.mxu0 0
    %122 = vmatprep.subr.bf16.mxu0 0
    %123 = vmatpush2.bf16.msra.mxu0 0
    %124 = vmatprep.subr.bf16.mxu0 0
    %125 = vmatpush2.bf16.msra.mxu0 0
    %126 = vmatprep.subr.bf16.mxu0 0
    %127 = vmatpush2.bf16.msra.mxu0 0
    %128 = vmatprep.subr.bf16.mxu0 0
    %129 = vmatpush2.bf16.msra.mxu0 0
    %130 = vmatprep.subr.bf16.mxu0 0
    %131 = vmatpush2.bf16.msra.mxu0 0
    %132 = vmatprep.mubr.bf16.mxu0 0
    %133 = vmatmul.mubr.bf16.gmra.mxu0 %v28
    %v134 = vpop.f32.mrf.mxu0
    %v135 = vadd.f32 %v50, %v134
    %v136 = vpop.f32.mrf.mxu0
    %v137 = vpop.f32.mrf.mxu0
    %v138 = vpop.f32.mrf.mxu0
    %139 = vdwg.mxu0
    %v140 = vld [vmem:[#allocation2] sm:$0xff]
    %v141 = vpack.c.bf16 %v135, %v135
    %v142 = vld [vmem:[%s3] sm:$0xf]
    %v143 = vld [vmem:[%s3 + $0x4] sm:$0xf]
    %v144 = vld [vmem:[%s3 + $0x8] sm:$0xf]
    %v145 = vld [vmem:[%s3 + $0xc] sm:$0xf]
    %v146 = vld [vmem:[%s3 + $0x10] sm:$0xf]
    %v147 = vld [vmem:[%s3 + $0x14] sm:$0xf]
    %v148 = vld [vmem:[%s3 + $0x18] sm:$0xf]
    %v149 = vld [vmem:[%s3 + $0x1c] sm:$0xf]
    %v150 = vld [vmem:[%s3 + $0x20] sm:$0xf]
    %v151 = vld [vmem:[%s3 + $0x24] sm:$0xf]
    %v152 = vld [vmem:[%s3 + $0x28] sm:$0xf]
    %v153 = vld [vmem:[%s3 + $0x2c] sm:$0xf]
    %v154 = vld [vmem:[%s3 + $0x30] sm:$0xf]
    %v155 = vld [vmem:[%s3 + $0x34] sm:$0xf]
    %v156 = vld [vmem:[%s3 + $0x38] sm:$0xf]
    %v157 = vld [vmem:[%s3 + $0x3c] sm:$0xf]
    %v174 = vunpack.c.l.b16 %v142
    %v175 = vunpack.c.l.b16 %v143
    %v176 = vunpack.c.l.b16 %v144
    %v177 = vunpack.c.l.b16 %v145
    %v178 = vunpack.c.l.b16 %v146
    %v179 = vunpack.c.l.b16 %v147
    %v180 = vunpack.c.l.b16 %v148
    %v181 = vunpack.c.l.b16 %v149
    %v182 = vunpack.c.l.b16 %v150
    %v183 = vunpack.c.l.b16 %v151
    %v184 = vunpack.c.l.b16 %v152
    %v185 = vunpack.c.l.b16 %v153
    %v186 = vunpack.c.l.b16 %v154
    %v187 = vunpack.c.l.b16 %v155
    %v188 = vunpack.c.l.b16 %v156
    %v189 = vunpack.c.l.b16 %v157
    %v190 = vpack.c.b16 %v175, %v174
    %v191 = vpack.c.b16 %v177, %v176
    %v192 = vpack.c.b16 %v179, %v178
    %v193 = vpack.c.b16 %v181, %v180
    %v194 = vpack.c.b16 %v183, %v182
    %v195 = vpack.c.b16 %v185, %v184
    %v196 = vpack.c.b16 %v187, %v186
    %v197 = vpack.c.b16 %v189, %v188
    %206 = vmatprep.subr.bf16.mxu0 0
    %207 = vmatpush1.bf16.msra.mxu0 %v197
    %208 = vmatprep.subr.bf16.mxu0 0
    %209 = vmatpush1.bf16.msra.mxu0 %v196
    %210 = vmatprep.subr.bf16.mxu0 0
    %211 = vmatpush1.bf16.msra.mxu0 %v195
    %212 = vmatprep.subr.bf16.mxu0 0
    %213 = vmatpush1.bf16.msra.mxu0 %v194
    %214 = vmatprep.subr.bf16.mxu0 0
    %215 = vmatpush1.bf16.msra.mxu0 %v193
    %216 = vmatprep.subr.bf16.mxu0 0
    %217 = vmatpush1.bf16.msra.mxu0 %v192
    %218 = vmatprep.subr.bf16.mxu0 0
    %219 = vmatpush1.bf16.msra.mxu0 %v191
    %220 = vmatprep.subr.bf16.mxu0 0
    %221 = vmatpush1.bf16.msra.mxu0 %v190
    %222 = vmatprep.subr.bf16.mxu0 0
    %223 = vmatpush2.bf16.msra.mxu0 0
    %224 = vmatprep.subr.bf16.mxu0 0
    %225 = vmatpush2.bf16.msra.mxu0 0
    %226 = vmatprep.subr.bf16.mxu0 0
    %227 = vmatpush2.bf16.msra.mxu0 0
    %228 = vmatprep.subr.bf16.mxu0 0
    %229 = vmatpush2.bf16.msra.mxu0 0
    %230 = vmatprep.subr.bf16.mxu0 0
    %231 = vmatpush2.bf16.msra.mxu0 0
    %232 = vmatprep.subr.bf16.mxu0 0
    %233 = vmatpush2.bf16.msra.mxu0 0
    %234 = vmatprep.subr.bf16.mxu0 0
    %235 = vmatpush2.bf16.msra.mxu0 0
    %236 = vmatprep.subr.bf16.mxu0 0
    %237 = vmatpush2.bf16.msra.mxu0 0
    %238 = vmatprep.mubr.bf16.mxu0 0
    %239 = vmatmul.mubr.bf16.gmra.mxu0 %v141
    %v240 = vpop.f32.mrf.mxu0
    %v241 = vadd.f32 0.0, %v240
    %v242 = vpop.f32.mrf.mxu0
    %v243 = vpop.f32.mrf.mxu0
    %v244 = vpop.f32.mrf.mxu0
    %245 = vdwg.mxu0
    %v246 = vadd.f32 %v140, %v241
    %247 = vst [vmem:[#allocation2] sm:$0xff] %v246
    // Predicated region
    $region26: #{ffn_forward.1} parent=1 // pred_check
      %p248 = pneg %p22
    $region27: #{ffn_forward.1} parent=1 // pred_check_branch
      %250 = sbr.rel (%p248) target = $region29
    $region28: #{ffn_forward.1} parent=1 // pred_region
      %v251 = vld [vmem:[#allocation2] sm:$0xff]
      %v252 = vld [vmem:[%s4] sm:$0x1]
      %v254 = vlaneseq
      %v255 = vshrl.u32 %v254, 7
      %v256 = vsub.s32 0, %v255
      %v257 = vrot.slane %v252, %v256
      %v259 = vadd.f32 %v251, %v257
      %260 = vst [vmem:[#allocation3] sm:$0xff] %v259
    $region29: #{ffn_forward.1} parent=1 // pred_fallthru
      _
    // Predicated region
    $region30: #{ffn_forward.1} parent=1 // pred_check
      _
    $region31: #{ffn_forward.1} parent=1 // pred_check_branch
      %262 = sbr.rel (0) target = $region33
    $region32: #{ffn_forward.1} parent=1 // pred_region
      %s264 = ssub.s32 128, 128
      %265 = vsyncadd [#allocation4], %s264
      %s267 = sshll.u32 [#allocation3], 4
      %s268 = int_to_ptr.vmem [resolvable:$true] %s267
      %270 = dma.vmem_to_hbm [thread:$0]  %s268, 128, %s5, [#allocation4]
    $region33: #{ffn_forward.1} parent=1 // pred_fallthru
      _
    // Predicated region
    $region34: #{ffn_forward.1} parent=1 // pred_check
      _
    $region35: #{ffn_forward.1} parent=1 // pred_check_branch
      %272 = sbr.rel (0) target = $region37
    $region36: #{ffn_forward.1} parent=1 // pred_region
      %273 = dma.done [#allocation4], 128
    $region37: #{ffn_forward.1} parent=1 // pred_fallthru
      _
    %274 = vsyncpa [#allocation4], 1

</llo_original>
